<compile_context>
chip_gen: v6e
topology: v6e:2x2x1
jax: 0.10.0
libtpu: 0.0.40
codegen_flags: <defaults>
</compile_context>

<pallas_src>
import jax
import jax.numpy as jnp
from jax.experimental import pallas as pl
from jax.experimental.pallas import tpu as pltpu


def _round_up(x, m):
    return (x + m - 1) // m * m


def _conditioner_proj_kernel(x_ref, w_ref, b_ref, m_ref, o_ref):
    """y = (x @ W + b) * mask for one (row, col) tile.

    x_ref : [tile_r, D_in_p]    VMEM (streamed per row step)
    w_ref : [D_in_p, tile_c]    VMEM (resident across row steps)
    b_ref : [1, tile_c]         VMEM (resident across row steps)
    m_ref : [tile_r, 1]         VMEM float32 (1.0 = keep, 0.0 = padding)
    o_ref : [tile_r, tile_c]    VMEM
    """
    y = jnp.dot(x_ref[...], w_ref[...], preferred_element_type=jnp.float32)
    y = (y + b_ref[...].astype(jnp.float32)) * m_ref[...]
    o_ref[...] = y.astype(o_ref.dtype)


def base_conditioner_forward(embeds, mask, weight, bias, *,
                             tile_rows=512, out_dtype=None,
                             compute_dtype=None,
                             vmem_budget_bytes=48 * 1024 * 1024):
    """Pallas forward of the conditioner output projection.

    embeds : [B, T, D_in]
    mask   : [B, T]        (bool or {0,1})
    weight : [D_in, D_out]
    bias   : [D_out]
    returns (embeds_out [B, T, D_out], mask unchanged)
    """
    B, T, D_in = embeds.shape
    D_out = weight.shape[1]
    if out_dtype is None:
        out_dtype = embeds.dtype
    if compute_dtype is None:
        compute_dtype = embeds.dtype

    rows = B * T
    d_in_p = _round_up(D_in, 128)
    d_out_p = _round_up(D_out, 128)

    in_bytes = jnp.dtype(compute_dtype).itemsize
    out_bytes = jnp.dtype(out_dtype).itemsize

    # ---- choose column tile: keep the (double-buffered) weight slab within
    # roughly half the VMEM budget; prefer a single fully-resident weight. ----
    max_c = (vmem_budget_bytes // 2) // max(2 * d_in_p * in_bytes, 1)
    max_c = max(128, (max_c // 128) * 128)
    tile_c = min(d_out_p, max_c)
    d_out_pad = _round_up(d_out_p, tile_c)
    num_col_tiles = d_out_pad // tile_c

    # ---- choose row tile: multiple of 256 by default (v6e/v7x MXU friendly);
    # tiny inputs collapse to one tile rounded to the 8-sublane granule. ----
    tile_r = tile_rows if rows >= tile_rows else _round_up(rows, 8)

    def working_set(tr, tc):
        return (2 * tr * d_in_p * in_bytes      # x double-buffer
                + 2 * tr * tc * out_bytes       # out double-buffer
                + 2 * tr * 4                    # mask double-buffer
                + 2 * d_in_p * tc * in_bytes    # weight (worst case 2 bufs)
                + 2 * tc * 4)                   # bias

    while tile_r > 128 and working_set(tile_r, tile_c) > vmem_budget_bytes:
        tile_r //= 2

    rows_p = _round_up(rows, tile_r)
    num_row_tiles = rows_p // tile_r

    # ---- host-side layout prep: lane/sublane-dense padding, flatten (B, T). ----
    x2d = embeds.reshape(rows, D_in).astype(compute_dtype)
    x2d = jnp.pad(x2d, ((0, rows_p - rows), (0, d_in_p - D_in)))
    m2d = mask.astype(jnp.float32).reshape(rows, 1)
    m2d = jnp.pad(m2d, ((0, rows_p - rows), (0, 0)))
    w2d = jnp.pad(weight.astype(compute_dtype),
                  ((0, d_in_p - D_in), (0, d_out_pad - D_out)))
    b2d = jnp.pad(bias.astype(jnp.float32).reshape(1, D_out),
                  ((0, 0), (0, d_out_pad - D_out)))

    flops = 2 * rows_p * d_in_p * d_out_pad
    bytes_accessed = (num_col_tiles * x2d.size * in_bytes
                      + w2d.size * in_bytes
                      + b2d.size * 4
                      + num_col_tiles * m2d.size * 4
                      + rows_p * d_out_pad * out_bytes)
    cost = pl.CostEstimate(flops=flops, transcendentals=0,
                           bytes_accessed=bytes_accessed)

    vmem_limit = int(min(max(int(1.25 * working_set(tile_r, tile_c)) + (2 << 20),
                             16 << 20), 64 << 20))

    if num_col_tiles == 1:
        # Fast path: weight fully resident, single streaming grid axis.
        grid = (num_row_tiles,)
        in_specs = [
            pl.BlockSpec((tile_r, d_in_p), lambda i: (i, 0)),    # x (streamed)
            pl.BlockSpec((d_in_p, tile_c), lambda i: (0, 0)),    # W (resident)
            pl.BlockSpec((1, tile_c), lambda i: (0, 0)),         # b (resident)
            pl.BlockSpec((tile_r, 1), lambda i: (i, 0)),         # mask (streamed)
        ]
        out_specs = pl.BlockSpec((tile_r, tile_c), lambda i: (i, 0))
        dim_sem = ("parallel",)
    else:
        # Large-weight path: outer column-tile axis keeps each weight slab
        # resident across the inner row sweep.
        grid = (num_col_tiles, num_row_tiles)
        in_specs = [
            pl.BlockSpec((tile_r, d_in_p), lambda j, i: (i, 0)),   # x
            pl.BlockSpec((d_in_p, tile_c), lambda j, i: (0, j)),   # W slab
            pl.BlockSpec((1, tile_c), lambda j, i: (0, j)),        # b slab
            pl.BlockSpec((tile_r, 1), lambda j, i: (i, 0)),        # mask
        ]
        out_specs = pl.BlockSpec((tile_r, tile_c), lambda j, i: (i, j))
        dim_sem = ("parallel", "parallel")

    out = pl.pallas_call(
        _conditioner_proj_kernel,
        out_shape=jax.ShapeDtypeStruct((rows_p, d_out_pad), out_dtype),
        grid_spec=pltpu.PrefetchScalarGridSpec(
            num_scalar_prefetch=0,
            grid=grid,
            in_specs=in_specs,
            out_specs=out_specs,
        ),
        compiler_params=pltpu.CompilerParams(
            dimension_semantics=dim_sem,
            vmem_limit_bytes=vmem_limit,
        ),
        cost_estimate=cost,
    )(x2d, w2d, b2d, m2d)

    out = out[:rows, :D_out].reshape(B, T, D_out)
    return out, mask


if __name__ == "__main__":
    # Small shapes consistent with the conditioner contract: [B, T, D] + mask [B, T].
    B, T, dim = 2, 8, 32
    output_dim = dim  # base class only carries `dim`

    key = jax.random.PRNGKey(0)
    k_x, k_w, k_b, k_w2, k_b2 = jax.random.split(key, 5)

    x = jax.random.normal(k_x, (B, T, dim), dtype=jnp.float32)
    # Simple padding mask: first sequence fully valid, second half-padded.
    mask = jnp.array(
        [[1] * T, [1] * (T // 2) + [0] * (T - T // 2)], dtype=jnp.float32
    )
    weight = jax.random.normal(k_w, (dim, output_dim), dtype=jnp.float32) * (
        1.0 / jnp.sqrt(dim)
    )
    bias = jax.random.normal(k_b, (output_dim,), dtype=jnp.float32) * 0.01

    # Reference (same semantics as nn.Linear + mask).
    ref = (jnp.einsum("btd,de->bte", x, weight) + bias) * mask[..., None]

    # ---- f32 path (tight check, resident-weight fast path) ----
    embeds_out, mask_out = base_conditioner_forward(x, mask, weight, bias)
    embeds_out = jax.block_until_ready(embeds_out)
    mask_out = jax.block_until_ready(mask_out)
    assert embeds_out.shape == (B, T, output_dim)
    assert jnp.allclose(embeds_out, ref, atol=1e-5, rtol=1e-5)
    assert jnp.array_equal(mask_out, mask)

    # ---- bf16 compute path (halved HBM traffic; loose check) ----
    embeds_bf, _ = base_conditioner_forward(
        x.astype(jnp.bfloat16), mask, weight, bias,
        compute_dtype=jnp.bfloat16, out_dtype=jnp.bfloat16)
    embeds_bf = jax.block_until_ready(embeds_bf)
    assert embeds_bf.dtype == jnp.bfloat16
    assert jnp.allclose(embeds_bf.astype(jnp.float32), ref, atol=0.1, rtol=0.1)

    # ---- column-tiled path (exercised by shrinking the VMEM budget) ----
    out_dim2 = 256
    weight2 = jax.random.normal(k_w2, (dim, out_dim2), dtype=jnp.float32) * (
        1.0 / jnp.sqrt(dim)
    )
    bias2 = jax.random.normal(k_b2, (out_dim2,), dtype=jnp.float32) * 0.01
    ref2 = (jnp.einsum("btd,de->bte", x, weight2) + bias2) * mask[..., None]
    embeds2, _ = base_conditioner_forward(
        x, mask, weight2, bias2, vmem_budget_bytes=1 << 16)
    embeds2 = jax.block_until_ready(embeds2)
    assert embeds2.shape == (B, T, out_dim2)
    assert jnp.allclose(embeds2, ref2, atol=1e-5, rtol=1e-5)

    print("KERNEL_OK")
</pallas_src>

<mosaic_0001>
module attributes {stable_mosaic.version = 11 : i64} {
  func.func @_conditioner_proj_kernel(%arg0: i32, %arg1: memref<16x128xf32, #tpu.memory_space<vmem>>, %arg2: memref<128x128xf32, #tpu.memory_space<vmem>>, %arg3: memref<1x128xf32, #tpu.memory_space<vmem>>, %arg4: memref<16x1xf32, #tpu.memory_space<vmem>>, %arg5: memref<16x128xf32, #tpu.memory_space<vmem>>) attributes {dimension_semantics = [#tpu.dimension_semantics<parallel>], iteration_bounds = array<i64: 1>, scalar_prefetch = 0 : i64, scratch_operands = 0 : i64, tpu.core_type = #tpu.core_type<tc>, window_params = [{transform_indices = @transform_0, window_bounds = array<i64: 16, 128>}, {pipeline_mode = #tpu.pipeline_mode<synchronous>, transform_indices = @transform_1, window_bounds = array<i64: 128, 128>}, {pipeline_mode = #tpu.pipeline_mode<synchronous>, transform_indices = @transform_2, window_bounds = array<i64: 1, 128>}, {transform_indices = @transform_3, window_bounds = array<i64: 16, 1>}, {transform_indices = @transform_4, window_bounds = array<i64: 16, 128>}]} {
    %c0 = arith.constant 0 : index
    %c0_0 = arith.constant 0 : index
    %0 = vector.load %arg1[%c0, %c0_0] : memref<16x128xf32, #tpu.memory_space<vmem>>, vector<16x128xf32>
    %c0_1 = arith.constant 0 : index
    %c0_2 = arith.constant 0 : index
    %1 = vector.load %arg2[%c0_1, %c0_2] : memref<128x128xf32, #tpu.memory_space<vmem>>, vector<128x128xf32>
    %cst = arith.constant dense<0.000000e+00> : vector<16x128xf32>
    %2 = tpu.matmul %0, %1, %cst {dimension_numbers = #tpu.dot_dimension_numbers<[1], [0], [0], [1], [0, 0, 1, 1], [], []>} : vector<16x128xf32>, vector<128x128xf32>, vector<16x128xf32> -> vector<16x128xf32>
    %c0_3 = arith.constant 0 : index
    %c0_4 = arith.constant 0 : index
    %3 = vector.load %arg3[%c0_3, %c0_4] : memref<1x128xf32, #tpu.memory_space<vmem>>, vector<1x128xf32>
    %4 = vector.broadcast %3 : vector<1x128xf32> to vector<16x128xf32>
    %5 = arith.addf %2, %4 : vector<16x128xf32>
    %c0_5 = arith.constant 0 : index
    %c0_6 = arith.constant 0 : index
    %6 = vector.load %arg4[%c0_5, %c0_6] : memref<16x1xf32, #tpu.memory_space<vmem>>, vector<16x1xf32>
    %7 = vector.broadcast %6 : vector<16x1xf32> to vector<16x128xf32>
    %8 = arith.mulf %5, %7 : vector<16x128xf32>
    %c0_7 = arith.constant 0 : index
    %c0_8 = arith.constant 0 : index
    %9 = vector.load %arg5[%c0_7, %c0_8] : memref<16x128xf32, #tpu.memory_space<vmem>>, vector<16x128xf32>
    tpu.vector_store %arg5[%c0_7, %c0_8], %8 {strides = array<i32>} : memref<16x128xf32, #tpu.memory_space<vmem>>, vector<16x128xf32>,
    return
  }
  func.func @transform_0(%arg0: i32) -> (i32, i32) {
    %c0_i32 = arith.constant 0 : i32
    %c0_i32_0 = arith.constant 0 : i32
    return %arg0, %c0_i32 : i32, i32
  }
  func.func @transform_1(%arg0: i32) -> (i32, i32) {
    %c0_i32 = arith.constant 0 : i32
    %c0_i32_0 = arith.constant 0 : i32
    %c0_i32_1 = arith.constant 0 : i32
    return %c0_i32, %c0_i32_0 : i32, i32
  }
  func.func @transform_2(%arg0: i32) -> (i32, i32) {
    %c0_i32 = arith.constant 0 : i32
    %c0_i32_0 = arith.constant 0 : i32
    %c0_i32_1 = arith.constant 0 : i32
    return %c0_i32, %c0_i32_0 : i32, i32
  }
  func.func @transform_3(%arg0: i32) -> (i32, i32) {
    %c0_i32 = arith.constant 0 : i32
    %c0_i32_0 = arith.constant 0 : i32
    return %arg0, %c0_i32 : i32, i32
  }
  func.func @transform_4(%arg0: i32) -> (i32, i32) {
    %c0_i32 = arith.constant 0 : i32
    %c0_i32_0 = arith.constant 0 : i32
    return %arg0, %c0_i32 : i32, i32
  }
}

</mosaic_0001>

<llo_original>
// kernel: tpu_custom_call.1
$region0: #{tpu_custom_call.1}
  #allocation0 [shape = 'u32[]', space=smem, size = 0x4, offset = 0x4, fixed_abs, tag = 'smem constant byte address 0x4 - core index']
  #allocation1 [shape = 'u32[144,128]{1,0:T(1,128)}', space=vmem, size = 0x12000, scoped, tag = 'internal scratch']
  %s0 = inlined_call_operand.vmem [shape: f32[16,128], index: 0, kind: input, shape index: {}]
  %s1 = inlined_call_operand.hbm [shape: f32[128,128], index: 1, kind: input, shape index: {}]
  %s2 = inlined_call_operand.vmem [shape: f32[1,128], index: 2, kind: input, shape index: {}]
  %s3 = inlined_call_operand.vmem [shape: f32[16,1], index: 3, kind: input, shape index: {}]
  %s4 = inlined_call_operand.hbm [shape: f32[16,128], index: 4, kind: output, shape index: {}]
  %s5 = sld [smem:[#allocation0]]
  $region30: #{tpu_custom_call.1} parent=0
    _
  %s7 = ssub.s32 1, %s5
  %s8 = scalar_select 0, %s7, %s5
  $region1: #{tpu_custom_call.1} parent=0
    #allocation2 [shape = 'u8[65536]{0}', space=vmem, size = 0x10000, scoped, tag = 'input window, operand 1, single buffered']
    #allocation3 [shape = 's32[1]{0}', space=sflag, size = 0x4, scoped, tag = 'scoped memory for tpu_custom_call.1']
    #allocation4 [shape = 's32[1]{0}', space=sflag, size = 0x4, scoped, tag = 'scoped memory for tpu_custom_call.1']
    #allocation5 [shape = 'u8[8192]{0}', space=vmem, size = 0x2000, scoped, tag = 'output window, operand 0, single buffered']
    %9 = vsyncpa [#allocation3], 0
    %10 = vsyncpa [#allocation4], 0
    // Predicated region
    $region2: #{tpu_custom_call.1} parent=1 // pred_check
      _
    $region3: #{tpu_custom_call.1} parent=1 // pred_check_branch
      %12 = sbr.rel (0) target = $region5
    $region4: #{tpu_custom_call.1} parent=1 // pred_region
      _
    $region5: #{tpu_custom_call.1} parent=1 // pred_fallthru
      _
    // Predicated region
    $region6: #{tpu_custom_call.1} parent=1 // pred_check
      _
    $region7: #{tpu_custom_call.1} parent=1 // pred_check_branch
      %14 = sbr.rel (0) target = $region9
    $region8: #{tpu_custom_call.1} parent=1 // pred_region
      %s16 = ssub.s32 2048, 2048
      %17 = vsyncadd [#allocation3], %s16
      %s18 = sshll.u32 [#allocation2], 4
      %s19 = int_to_ptr.vmem [resolvable:$true] %s18
      %24 = dma.hbm_to_vmem [thread:$0]  %s1, 2048, %s19, [#allocation3], 128, 128, 8
    $region9: #{tpu_custom_call.1} parent=1 // pred_fallthru
      _
    // Predicated region
    $region10: #{tpu_custom_call.1} parent=1 // pred_check
      _
    $region11: #{tpu_custom_call.1} parent=1 // pred_check_branch
      %26 = sbr.rel (0) target = $region13
    $region12: #{tpu_custom_call.1} parent=1 // pred_region
      _
    $region13: #{tpu_custom_call.1} parent=1 // pred_fallthru
      _
    // Predicated region
    $region14: #{tpu_custom_call.1} parent=1 // pred_check
      _
    $region15: #{tpu_custom_call.1} parent=1 // pred_check_branch
      %28 = sbr.rel (0) target = $region17
    $region16: #{tpu_custom_call.1} parent=1 // pred_region
      _
    $region17: #{tpu_custom_call.1} parent=1 // pred_fallthru
      _
    // Predicated region
    $region18: #{tpu_custom_call.1} parent=1 // pred_check
      _
    $region19: #{tpu_custom_call.1} parent=1 // pred_check_branch
      %30 = sbr.rel (0) target = $region21
    $region20: #{tpu_custom_call.1} parent=1 // pred_region
      %31 = dma.done [#allocation3], 2048
    $region21: #{tpu_custom_call.1} parent=1 // pred_fallthru
      _
    %v32 = vld [vmem:[%s0] sm:$0xff]
    %v33 = vld [vmem:[%s0 + $0x8] sm:$0xff]
    %v34 = vld [vmem:[#allocation2] sm:$0xff]
    %v35 = vld [vmem:[#allocation2 + $0x8] sm:$0xff]
    %v36 = vld [vmem:[#allocation2 + $0x10] sm:$0xff]
    %v37 = vld [vmem:[#allocation2 + $0x18] sm:$0xff]
    %v38 = vld [vmem:[#allocation2 + $0x20] sm:$0xff]
    %v39 = vld [vmem:[#allocation2 + $0x28] sm:$0xff]
    %v40 = vld [vmem:[#allocation2 + $0x30] sm:$0xff]
    %v41 = vld [vmem:[#allocation2 + $0x38] sm:$0xff]
    %v42 = vld [vmem:[#allocation2 + $0x40] sm:$0xff]
    %v43 = vld [vmem:[#allocation2 + $0x48] sm:$0xff]
    %v44 = vld [vmem:[#allocation2 + $0x50] sm:$0xff]
    %v45 = vld [vmem:[#allocation2 + $0x58] sm:$0xff]
    %v46 = vld [vmem:[#allocation2 + $0x60] sm:$0xff]
    %v47 = vld [vmem:[#allocation2 + $0x68] sm:$0xff]
    %v48 = vld [vmem:[#allocation2 + $0x70] sm:$0xff]
    %v49 = vld [vmem:[#allocation2 + $0x78] sm:$0xff]
    %v50 = vld [vmem:[%s2] sm:$0x1]
    %v52 = vlaneseq
    %v53 = vshrl.u32 %v52, 7
    %v54 = vsub.s32 0, %v53
    %v55 = vrot.slane %v50, %v54
    %57 = vmatprep.subr.mxu0 0.0
    %58 = vmatpush1.msra.mxu0 %v49
    %59 = vmatprep.subr.mxu0 0.0
    %60 = vmatpush1.msra.mxu0 %v48
    %61 = vmatprep.subr.mxu0 0.0
    %62 = vmatpush1.msra.mxu0 %v47
    %63 = vmatprep.subr.mxu0 0.0
    %64 = vmatpush1.msra.mxu0 %v46
    %65 = vmatprep.subr.mxu0 0.0
    %66 = vmatpush1.msra.mxu0 %v45
    %67 = vmatprep.subr.mxu0 0.0
    %68 = vmatpush1.msra.mxu0 %v44
    %69 = vmatprep.subr.mxu0 0.0
    %70 = vmatpush1.msra.mxu0 %v43
    %71 = vmatprep.subr.mxu0 0.0
    %72 = vmatpush1.msra.mxu0 %v42
    %73 = vmatprep.subr.mxu0 0.0
    %74 = vmatpush1.msra.mxu0 %v41
    %75 = vmatprep.subr.mxu0 0.0
    %76 = vmatpush1.msra.mxu0 %v40
    %77 = vmatprep.subr.mxu0 0.0
    %78 = vmatpush1.msra.mxu0 %v39
    %79 = vmatprep.subr.mxu0 0.0
    %80 = vmatpush1.msra.mxu0 %v38
    %81 = vmatprep.subr.mxu0 0.0
    %82 = vmatpush1.msra.mxu0 %v37
    %83 = vmatprep.subr.mxu0 0.0
    %84 = vmatpush1.msra.mxu0 %v36
    %85 = vmatprep.subr.mxu0 0.0
    %86 = vmatpush1.msra.mxu0 %v35
    %87 = vmatprep.subr.mxu0 0.0
    %88 = vmatpush1.msra.mxu0 %v34
    %89 = vmatprep.subr.mxu0 0.0
    %90 = vmatpush2.msra.mxu0 0.0
    %91 = vmatprep.subr.mxu0 0.0
    %92 = vmatpush2.msra.mxu0 0.0
    %93 = vmatprep.subr.mxu0 0.0
    %94 = vmatpush2.msra.mxu0 0.0
    %95 = vmatprep.subr.mxu0 0.0
    %96 = vmatpush2.msra.mxu0 0.0
    %97 = vmatprep.subr.mxu0 0.0
    %98 = vmatpush2.msra.mxu0 0.0
    %99 = vmatprep.subr.mxu0 0.0
    %100 = vmatpush2.msra.mxu0 0.0
    %101 = vmatprep.subr.mxu0 0.0
    %102 = vmatpush2.msra.mxu0 0.0
    %103 = vmatprep.subr.mxu0 0.0
    %104 = vmatpush2.msra.mxu0 0.0
    %105 = vmatprep.subr.mxu0 0.0
    %106 = vmatpush2.msra.mxu0 0.0
    %107 = vmatprep.subr.mxu0 0.0
    %108 = vmatpush2.msra.mxu0 0.0
    %109 = vmatprep.subr.mxu0 0.0
    %110 = vmatpush2.msra.mxu0 0.0
    %111 = vmatprep.subr.mxu0 0.0
    %112 = vmatpush2.msra.mxu0 0.0
    %113 = vmatprep.subr.mxu0 0.0
    %114 = vmatpush2.msra.mxu0 0.0
    %115 = vmatprep.subr.mxu0 0.0
    %116 = vmatpush2.msra.mxu0 0.0
    %117 = vmatprep.subr.mxu0 0.0
    %118 = vmatpush2.msra.mxu0 0.0
    %119 = vmatprep.subr.mxu0 0.0
    %120 = vmatpush2.msra.mxu0 0.0
    %121 = vmatprep.mubr.f32.mxu0 0.0
    %122 = vmatmul.mubr.f32.gmra.mxu0 %v32
    %v123 = vpop.f32.mrf.mxu0
    %v124 = vadd.f32 %v55, %v123
    %v125 = vpop.f32.mrf.mxu0
    %126 = vmatprep.mubr.f32.mxu0 0.0
    %127 = vmatmul.mubr.f32.gmra.mxu0 %v33
    %v128 = vpop.f32.mrf.mxu0
    %v129 = vadd.f32 %v55, %v128
    %v130 = vpop.f32.mrf.mxu0
    %131 = vdwg.mxu0
    %v132 = vld [vmem:[%s3] sm:$0xff]
    %v133 = vld [vmem:[%s3 + $0x8] sm:$0xff]
    %135 = vset.pattern.permute.xlu0 0
    %136 = vperm.xlu0 %135, %v132
    %v137 = vpop.permute.xlu0 %136
    %140 = vset.pattern.permute.xlu0 0
    %141 = vperm.xlu0 %140, %v133
    %v142 = vpop.permute.xlu0 %141
    %v144 = vmul.f32 %v124, %v137
    %v145 = vmul.f32 %v129, %v142
    %146 = vst [vmem:[#allocation5] sm:$0xff] %v144
    %147 = vst [vmem:[#allocation5 + $0x8] sm:$0xff] %v145
    // Predicated region
    $region22: #{tpu_custom_call.1} parent=1 // pred_check
      _
    $region23: #{tpu_custom_call.1} parent=1 // pred_check_branch
      %149 = sbr.rel (0) target = $region25
    $region24: #{tpu_custom_call.1} parent=1 // pred_region
      %s151 = ssub.s32 256, 256
      %152 = vsyncadd [#allocation4], %s151
      %s153 = sshll.u32 [#allocation5], 4
      %s154 = int_to_ptr.vmem [resolvable:$true] %s153
      %159 = dma.vmem_to_hbm [thread:$0]  %s154, 256, %s4, [#allocation4], 128, 128, 8
    $region25: #{tpu_custom_call.1} parent=1 // pred_fallthru
      _
    // Predicated region
    $region26: #{tpu_custom_call.1} parent=1 // pred_check
      _
    $region27: #{tpu_custom_call.1} parent=1 // pred_check_branch
      %161 = sbr.rel (0) target = $region29
    $region28: #{tpu_custom_call.1} parent=1 // pred_region
      %162 = dma.done [#allocation4], 256
    $region29: #{tpu_custom_call.1} parent=1 // pred_fallthru
      _
    %163 = vsyncpa [#allocation3], 1
    %164 = vsyncpa [#allocation4], 1

</llo_original>
